<compile_context>
chip_gen: v7x
topology: tpu7x:2x2x1
jax: 0.10.0
libtpu: 0.0.40
codegen_flags: <defaults>
</compile_context>

<pallas_src>
import functools

import jax
import jax.numpy as jnp
from jax.experimental import pallas as pl
from jax.experimental.pallas import tpu as pltpu  # noqa: F401  (not needed for this tiny, grid-less kernel)


def dueling_kernel(x_ref, w_ref, b_ref, o_ref, *, n_actions, a_pad):
    """Fused dueling head: one GEMM produces value, advantage, and the row means.

    x_ref: (B, F)          bf16 activations
    w_ref: (F, 2*a_pad)    bf16 fused weights:
                             lanes [0, A)            -> value head
                             lane  A                 -> advantage-mean column
                             lanes [a_pad, a_pad+A)  -> advantage head
                             all other lanes zero
    b_ref: (1, 2*a_pad)    f32 fused bias row (same layout)
    o_ref: (B, a_pad)      f32 output; only lanes [0, A) are meaningful
    """
    x = x_ref[...]
    w = w_ref[...]
    # Single MXU matmul for both heads + the fused mean column (f32 accumulate).
    y = jnp.dot(x, w, preferred_element_type=jnp.float32) + b_ref[...]

    value = y[:, :a_pad]                        # (B, a_pad)  lane A carries the mean head; sliced off later
    adv = y[:, a_pad:]                          # (B, a_pad)  padded lanes are exactly 0
    mean_col = y[:, n_actions:n_actions + 1]    # (B, 1): advantage.mean(1) per batch row (from the GEMM)

    # Bug-compatible broadcast: subtract the mean of batch row j from column j.
    # Move the (B, 1) column into lanes [0, B) of a (1, a_pad) row via a
    # padded-identity mask + sublane reduction (no transpose / pad / concat ops).
    b_rows = value.shape[0]
    row_ids = jax.lax.broadcasted_iota(jnp.int32, (b_rows, a_pad), 0)
    col_ids = jax.lax.broadcasted_iota(jnp.int32, (b_rows, a_pad), 1)
    eye_pad = (row_ids == col_ids).astype(jnp.float32)                # (B, a_pad)
    mean_row = jnp.sum(mean_col * eye_pad, axis=0, keepdims=True)     # (1, a_pad); lane j<B holds mean of row j

    o_ref[...] = (value + adv - mean_row).astype(o_ref.dtype)


def _lane_pad(n_actions):
    # Room for the A action columns plus the fused mean column, rounded to 128 lanes.
    return ((n_actions + 1 + 127) // 128) * 128


def _fold_params(wv, bv, wa, ba, a_pad):
    """Fold both Linear layers + the mean column + biases into one weight/bias pair."""
    n_features, n_actions = wv.shape
    wv_pad = jnp.zeros((n_features, a_pad), jnp.float32).at[:, :n_actions].set(wv)
    wv_pad = wv_pad.at[:, n_actions].set(jnp.mean(wa, axis=1))        # fused advantage-mean column
    wa_pad = jnp.zeros((n_features, a_pad), jnp.float32).at[:, :n_actions].set(wa)
    w_cat = jnp.concatenate([wv_pad, wa_pad], axis=1).astype(jnp.bfloat16)   # (F, 2*a_pad) bf16

    b_cat = jnp.zeros((1, 2 * a_pad), jnp.float32)
    b_cat = b_cat.at[0, :n_actions].set(bv.reshape(-1))
    b_cat = b_cat.at[0, n_actions].set(jnp.mean(ba))
    b_cat = b_cat.at[0, a_pad:a_pad + n_actions].set(ba.reshape(-1))
    return w_cat, b_cat


def dqn_dueling_forward(x, wv, bv, wa, ba):
    """value + advantage - advantage.mean(1), exactly as the PyTorch forward."""
    B, F = x.shape
    A = wv.shape[1]
    # The original module's broadcast of advantage.mean(1) (shape (B,)) against
    # (B, A) along the last axis is only defined when batch == n_actions.
    assert B == A, "DQNDuelingNet.forward requires batch == n_actions"

    a_pad = _lane_pad(A)
    w_cat, b_cat = _fold_params(wv, bv, wa, ba, a_pad)   # parameter-side; done once in a real setup
    x_bf16 = x.astype(jnp.bfloat16)                      # bf16 MXU operand, half the activation DMA bytes

    out_pad = pl.pallas_call(
        functools.partial(dueling_kernel, n_actions=A, a_pad=a_pad),
        out_shape=jax.ShapeDtypeStruct((B, a_pad), jnp.float32),
        in_specs=[
            pl.BlockSpec((B, F), lambda: (0, 0)),
            pl.BlockSpec((F, 2 * a_pad), lambda: (0, 0)),
            pl.BlockSpec((1, 2 * a_pad), lambda: (0, 0)),
        ],
        out_specs=pl.BlockSpec((B, a_pad), lambda: (0, 0)),
    )(x_bf16, w_cat, b_cat)

    return out_pad[:, :A]


def init_linear_params(key, n_in, n_out):
    """Deterministic init mimicking torch.nn.Linear (uniform +/- 1/sqrt(fan_in))."""
    k_w, k_b = jax.random.split(key)
    bound = 1.0 / (n_in ** 0.5)
    w = jax.random.uniform(k_w, (n_in, n_out), jnp.float32, -bound, bound)
    b = jax.random.uniform(k_b, (1, n_out), jnp.float32, -bound, bound)
    return w, b


if __name__ == "__main__":
    # batch == n_actions is required by the original forward's broadcast (see header).
    B = 8
    n_features = 32
    n_actions = 8

    key = jax.random.PRNGKey(0)
    k_x, k_v, k_a = jax.random.split(key, 3)

    x = jax.random.normal(k_x, (B, n_features), jnp.float32)
    wv, bv = init_linear_params(k_v, n_features, n_actions)   # value_layer
    wa, ba = init_linear_params(k_a, n_features, n_actions)   # advantage_layer

    out = jax.block_until_ready(dqn_dueling_forward(x, wv, bv, wa, ba))
    assert out.shape == (B, n_actions)

    # Reference 1 (tight): identical bf16-operand math using the same fused params.
    a_pad = _lane_pad(n_actions)
    w_cat, b_cat = _fold_params(wv, bv, wa, ba, a_pad)
    y = jnp.dot(x.astype(jnp.bfloat16), w_cat, preferred_element_type=jnp.float32) + b_cat
    ref_matched = (y[:, :n_actions] + y[:, a_pad:a_pad + n_actions]
                   - y[:, n_actions][None, :])
    assert jnp.allclose(out, ref_matched, atol=1e-4, rtol=1e-4)

    # Reference 2 (loose, only covers bf16 operand rounding): exact f32 PyTorch semantics.
    value_f32 = x @ wv + bv
    adv_f32 = x @ wa + ba
    ref_f32 = value_f32 + adv_f32 - adv_f32.mean(axis=1)[None, :]
    assert jnp.allclose(out, ref_f32, atol=1e-1, rtol=1e-1)

    print("KERNEL_OK")
</pallas_src>

<mosaic_0001>
module attributes {stable_mosaic.version = 11 : i64} {
  func.func @dueling_kernel(%arg0: memref<8x32xbf16, #tpu.memory_space<vmem>>, %arg1: memref<32x256xbf16, #tpu.memory_space<vmem>>, %arg2: memref<1x256xf32, #tpu.memory_space<vmem>>, %arg3: memref<8x128xf32, #tpu.memory_space<vmem>>) attributes {dimension_semantics = [], scalar_prefetch = 0 : i64, scratch_operands = 0 : i64, tpu.core_type = #tpu.core_type<tc>} {
    %c0 = arith.constant 0 : index
    %c0_0 = arith.constant 0 : index
    %0 = vector.load %arg0[%c0, %c0_0] : memref<8x32xbf16, #tpu.memory_space<vmem>>, vector<8x32xbf16>
    %c0_1 = arith.constant 0 : index
    %c0_2 = arith.constant 0 : index
    %1 = vector.load %arg1[%c0_1, %c0_2] : memref<32x256xbf16, #tpu.memory_space<vmem>>, vector<32x256xbf16>
    %cst = arith.constant dense<0.000000e+00> : vector<8x256xf32>
    %2 = tpu.matmul %0, %1, %cst {dimension_numbers = #tpu.dot_dimension_numbers<[1], [0], [0], [1], [0, 0, 1, 1], [], []>} : vector<8x32xbf16>, vector<32x256xbf16>, vector<8x256xf32> -> vector<8x256xf32>
    %c0_3 = arith.constant 0 : index
    %c0_4 = arith.constant 0 : index
    %3 = vector.load %arg2[%c0_3, %c0_4] : memref<1x256xf32, #tpu.memory_space<vmem>>, vector<1x256xf32>
    %4 = vector.broadcast %3 : vector<1x256xf32> to vector<8x256xf32>
    %5 = arith.addf %2, %4 : vector<8x256xf32>
    %6 = vector.extract_strided_slice %5 {offsets = [0, 0], sizes = [8, 128], strides = [1, 1]} : vector<8x256xf32> to vector<8x128xf32>
    %7 = vector.extract_strided_slice %5 {offsets = [0, 128], sizes = [8, 128], strides = [1, 1]} : vector<8x256xf32> to vector<8x128xf32>
    %8 = vector.extract_strided_slice %5 {offsets = [0, 8], sizes = [8, 1], strides = [1, 1]} : vector<8x256xf32> to vector<8x1xf32>
    %9 = tpu.iota {dimensions = array<i32: 0>} : vector<8x128xi32>
    %10 = tpu.iota {dimensions = array<i32: 1>} : vector<8x128xi32>
    %11 = arith.cmpi eq, %9, %10 : vector<8x128xi32>
    %12 = arith.extui %11 : vector<8x128xi1> to vector<8x128xi32>
    %13 = arith.sitofp %12 : vector<8x128xi32> to vector<8x128xf32>
    %14 = vector.broadcast %8 : vector<8x1xf32> to vector<8x128xf32>
    %15 = arith.mulf %14, %13 : vector<8x128xf32>
    %cst_5 = arith.constant dense<0.000000e+00> : vector<128xf32>
    %16 = vector.multi_reduction <add>, %15, %cst_5 [0] : vector<8x128xf32> to vector<128xf32>
    %17 = vector.shape_cast %16 : vector<128xf32> to vector<1x128xf32>
    %18 = arith.addf %6, %7 : vector<8x128xf32>
    %19 = vector.broadcast %17 : vector<1x128xf32> to vector<8x128xf32>
    %20 = arith.subf %18, %19 : vector<8x128xf32>
    %c0_6 = arith.constant 0 : index
    %c0_7 = arith.constant 0 : index
    %21 = vector.load %arg3[%c0_6, %c0_7] : memref<8x128xf32, #tpu.memory_space<vmem>>, vector<8x128xf32>
    tpu.vector_store %arg3[%c0_6, %c0_7], %20 {strides = array<i32>} : memref<8x128xf32, #tpu.memory_space<vmem>>, vector<8x128xf32>,
    return
  }
}

</mosaic_0001>

<llo_original>
// kernel: tpu_custom_call.1
$region0: #{tpu_custom_call.1}
  #allocation0 [shape = 'u32[]', space=smem, size = 0x4, offset = 0x4, fixed_abs, tag = 'smem constant byte address 0x4 - core index']
  #allocation1 [shape = 'u32[144,128]{1,0:T(1,128)}', space=vmem, size = 0x12000, scoped, tag = 'internal scratch']
  %s0 = inlined_call_operand.hbm [shape: bf16[8,32], index: 0, kind: input, shape index: {}]
  %s1 = inlined_call_operand.hbm [shape: bf16[32,256], index: 1, kind: input, shape index: {}]
  %s2 = inlined_call_operand.vmem [shape: f32[1,256], index: 2, kind: input, shape index: {}]
  %s3 = inlined_call_operand.hbm [shape: f32[8,128], index: 3, kind: output, shape index: {}]
  %s4 = sld [smem:[#allocation0]]
  $region30: #{tpu_custom_call.1} parent=0
    _
  %s6 = ssub.s32 1, %s4
  %s7 = scalar_select 0, %s6, %s4
  $region1: #{tpu_custom_call.1} parent=0
    #allocation2 [shape = 'u8[2048]{0}', space=vmem, size = 0x800, scoped, tag = 'input window, operand 0, single buffered']
    #allocation3 [shape = 's32[1]{0}', space=sflag, size = 0x4, scoped, tag = 'scoped memory for tpu_custom_call.1']
    #allocation4 [shape = 's32[1]{0}', space=sflag, size = 0x4, scoped, tag = 'scoped memory for tpu_custom_call.1']
    #allocation5 [shape = 'u8[16384]{0}', space=vmem, size = 0x4000, scoped, tag = 'input window, operand 1, single buffered']
    #allocation6 [shape = 's32[1]{0}', space=sflag, size = 0x4, scoped, tag = 'scoped memory for tpu_custom_call.1']
    #allocation7 [shape = 'u8[4096]{0}', space=vmem, size = 0x1000, scoped, tag = 'output window, operand 0, single buffered']
    %8 = vsyncpa [#allocation3], 0
    %9 = vsyncpa [#allocation6], 0
    %10 = vsyncpa [#allocation4], 0
    // Predicated region
    $region2: #{tpu_custom_call.1} parent=1 // pred_check
      _
    $region3: #{tpu_custom_call.1} parent=1 // pred_check_branch
      %12 = sbr.rel (0) target = $region5
    $region4: #{tpu_custom_call.1} parent=1 // pred_region
      %s14 = ssub.s32 64, 64
      %15 = vsyncadd [#allocation3], %s14
      %s17 = sshll.u32 [#allocation2], 4
      %s18 = int_to_ptr.vmem [resolvable:$true] %s17
      %20 = dma.hbm_to_vmem [thread:$0]  %s0, 64, %s18, [#allocation3]
    $region5: #{tpu_custom_call.1} parent=1 // pred_fallthru
      _
    // Predicated region
    $region6: #{tpu_custom_call.1} parent=1 // pred_check
      _
    $region7: #{tpu_custom_call.1} parent=1 // pred_check_branch
      %22 = sbr.rel (0) target = $region9
    $region8: #{tpu_custom_call.1} parent=1 // pred_region
      %s24 = ssub.s32 512, 512
      %25 = vsyncadd [#allocation6], %s24
      %s26 = sshll.u32 [#allocation5], 4
      %s27 = int_to_ptr.vmem [resolvable:$true] %s26
      %32 = dma.hbm_to_vmem [thread:$0]  %s1, 512, %s27, [#allocation6], 128, 128, 8
    $region9: #{tpu_custom_call.1} parent=1 // pred_fallthru
      _
    // Predicated region
    $region10: #{tpu_custom_call.1} parent=1 // pred_check
      _
    $region11: #{tpu_custom_call.1} parent=1 // pred_check_branch
      %34 = sbr.rel (0) target = $region13
    $region12: #{tpu_custom_call.1} parent=1 // pred_region
      _
    $region13: #{tpu_custom_call.1} parent=1 // pred_fallthru
      _
    // Predicated region
    $region14: #{tpu_custom_call.1} parent=1 // pred_check
      _
    $region15: #{tpu_custom_call.1} parent=1 // pred_check_branch
      %36 = sbr.rel (0) target = $region17
    $region16: #{tpu_custom_call.1} parent=1 // pred_region
      %37 = dma.done [#allocation3], 64
    $region17: #{tpu_custom_call.1} parent=1 // pred_fallthru
      _
    // Predicated region
    $region18: #{tpu_custom_call.1} parent=1 // pred_check
      _
    $region19: #{tpu_custom_call.1} parent=1 // pred_check_branch
      %39 = sbr.rel (0) target = $region21
    $region20: #{tpu_custom_call.1} parent=1 // pred_region
      %40 = dma.done [#allocation6], 512
    $region21: #{tpu_custom_call.1} parent=1 // pred_fallthru
      _
    %v42 = vld [vmem:[#allocation2] sm:$0xf]
    %v43 = vld [vmem:[#allocation5] sm:$0xff]
    %v44 = vld [vmem:[#allocation5 + $0x8] sm:$0xff]
    %v45 = vld [vmem:[#allocation5 + $0x10] sm:$0xff]
    %v46 = vld [vmem:[#allocation5 + $0x18] sm:$0xff]
    %v47 = vld [vmem:[%s2] sm:$0x3]
    %v49 = vlaneseq
    %v50 = vshrl.u32 %v49, 7
    %v51 = vsub.s32 0, %v50
    %v52 = vrot.slane %v47, %v51
    %v53 = vlaneseq
    %v54 = vshrl.u32 %v53, 7
    %v55 = vsub.s32 1, %v54
    %v56 = vrot.slane %v47, %v55
    %v63 = vunpack.c.l.b16 %v43
    %v64 = vunpack.c.h.b16 %v43
    %v65 = vunpack.c.l.b16 %v44
    %v66 = vunpack.c.h.b16 %v44
    %v67 = vunpack.c.l.b16 %v45
    %v68 = vunpack.c.h.b16 %v45
    %v69 = vunpack.c.l.b16 %v46
    %v70 = vunpack.c.h.b16 %v46
    %v71 = vpack.c.b16 %v65, %v63
    %v72 = vpack.c.b16 %v66, %v64
    %v73 = vpack.c.b16 %v69, %v67
    %v74 = vpack.c.b16 %v70, %v68
    %vm79 = vcmask 261120
    %v81 = vsel %vm79, %v42, 0
    %83 = vmatprep.subr.bf16.mxu0 %v72
    %84 = vmatpush1.bf16.msra.mxu0 %v71
    %85 = vmatprep.subr.bf16.mxu0 %v74
    %86 = vmatpush1.bf16.msra.mxu0 %v73
    %87 = vmatprep.subr.bf16.mxu0 0
    %88 = vmatpush1.bf16.msra.mxu0 0
    %89 = vmatprep.subr.bf16.mxu0 0
    %90 = vmatpush1.bf16.msra.mxu0 0
    %91 = vmatprep.subr.bf16.mxu0 0
    %92 = vmatpush1.bf16.msra.mxu0 0
    %93 = vmatprep.subr.bf16.mxu0 0
    %94 = vmatpush1.bf16.msra.mxu0 0
    %95 = vmatprep.subr.bf16.mxu0 0
    %96 = vmatpush1.bf16.msra.mxu0 0
    %97 = vmatprep.subr.bf16.mxu0 0
    %98 = vmatpush1.bf16.msra.mxu0 0
    %99 = vmatprep.subr.bf16.mxu0 0
    %100 = vmatpush1.bf16.msra.mxu0 0
    %101 = vmatprep.subr.bf16.mxu0 0
    %102 = vmatpush1.bf16.msra.mxu0 0
    %103 = vmatprep.subr.bf16.mxu0 0
    %104 = vmatpush1.bf16.msra.mxu0 0
    %105 = vmatprep.subr.bf16.mxu0 0
    %106 = vmatpush1.bf16.msra.mxu0 0
    %107 = vmatprep.subr.bf16.mxu0 0
    %108 = vmatpush1.bf16.msra.mxu0 0
    %109 = vmatprep.subr.bf16.mxu0 0
    %110 = vmatpush1.bf16.msra.mxu0 0
    %111 = vmatprep.subr.bf16.mxu0 0
    %112 = vmatpush1.bf16.msra.mxu0 0
    %113 = vmatprep.subr.bf16.mxu0 0
    %114 = vmatpush1.bf16.msra.mxu0 0
    %115 = vmatprep.mubr.bf16.mxu0 0
    %116 = vmatmul.mubr.bf16.gmra.mrb[0].mxu0 %v81
    %v117 = vpop.f32.mrb[0].mxu0
    %v118 = vadd.f32 %v52, %v117
    %v119 = vpop.f32.mrb[0].mxu0
    %v120 = vadd.f32 %v56, %v119
    %v121 = vpop.f32.mrb[0].mxu0
    %v122 = vpop.f32.mrb[0].mxu0
    %123 = vdwg.mxu0
    %v124 = vlaneseq
    %v125 = vshrl.u32 %v124, 7
    %v126 = vlaneseq
    %v127 = vand.u32 %v126, 127
    %vm128 = vcmp.eq.s32.totalorder %v125, %v127
    %v129 = vsel %vm128, 1, 0
    %v130 = vcvt.s32.f32 %v129
    %132 = vset.pattern.permute.xlu0 8
    %133 = vperm.xlu0 %132, %v118
    %v134 = vpop.permute.xlu0 %133
    %v136 = vmul.f32 %v134, %v130
    %v137 = vrot.slane %v136, 4
    %v138 = vadd.f32 %v136, %v137
    %v139 = vrot.slane %v138, 2
    %v140 = vadd.f32 %v138, %v139
    %v141 = vrot.slane %v140, 1
    %v142 = vadd.f32 %v140, %v141
    %v143 = vadd.f32 %v118, %v120
    %v144 = vsub.f32 %v143, %v142
    %145 = vst [vmem:[#allocation7] sm:$0xff] %v144
    // Predicated region
    $region22: #{tpu_custom_call.1} parent=1 // pred_check
      _
    $region23: #{tpu_custom_call.1} parent=1 // pred_check_branch
      %147 = sbr.rel (0) target = $region25
    $region24: #{tpu_custom_call.1} parent=1 // pred_region
      %s149 = ssub.s32 128, 128
      %150 = vsyncadd [#allocation4], %s149
      %s152 = sshll.u32 [#allocation7], 4
      %s153 = int_to_ptr.vmem [resolvable:$true] %s152
      %155 = dma.vmem_to_hbm [thread:$0]  %s153, 128, %s3, [#allocation4]
    $region25: #{tpu_custom_call.1} parent=1 // pred_fallthru
      _
    // Predicated region
    $region26: #{tpu_custom_call.1} parent=1 // pred_check
      _
    $region27: #{tpu_custom_call.1} parent=1 // pred_check_branch
      %157 = sbr.rel (0) target = $region29
    $region28: #{tpu_custom_call.1} parent=1 // pred_region
      %158 = dma.done [#allocation4], 128
    $region29: #{tpu_custom_call.1} parent=1 // pred_fallthru
      _
    %159 = vsyncpa [#allocation3], 1
    %160 = vsyncpa [#allocation6], 1
    %161 = vsyncpa [#allocation4], 1

</llo_original>
